<compile_context>
chip_gen: v5e
topology: v5e:2x2
jax: 0.10.0
libtpu: 0.0.40
codegen_flags: <defaults>
</compile_context>

<pallas_src>
import math
import functools

import jax
import jax.numpy as jnp
from jax import lax
from jax.experimental import pallas as pl
from jax.experimental.pallas import tpu as pltpu

TAU_U = 0.01
LANE = 128


# ----------------------------------------------------------------------------
# Kernels
# ----------------------------------------------------------------------------
def _sgru_state_kernel(x_ref, h_ref, v_ref, trace_ref, dU_ref,
                       wxz_ref, wxr_ref, wxn_ref,
                       whz_ref, whr_ref, whn_ref,
                       bz_ref, br_ref, bxn_ref, bhn_ref, alpha_ref,
                       new_v_ref, new_h_ref, new_trace_ref,
                       *, mxu_dtype):
    """Pass A: gates, voltage, spike activation, trace — one hidden column tile."""
    f32 = jnp.float32
    x = x_ref[...]                       # (B, Din), already MXU dtype
    h = h_ref[...]                       # (B, Hp) f32 (resident; tiny)
    h_m = h.astype(mxu_dtype)            # bf16 copy for the weight matmuls only

    gz = (jnp.dot(x, wxz_ref[...], preferred_element_type=f32)
          + jnp.dot(h_m, whz_ref[...], preferred_element_type=f32)
          + bz_ref[...])
    gr = (jnp.dot(x, wxr_ref[...], preferred_element_type=f32)
          + jnp.dot(h_m, whr_ref[...], preferred_element_type=f32)
          + br_ref[...])
    z = jax.nn.sigmoid(gz)
    r = jax.nn.sigmoid(gr)

    # h @ dU.T column tile: dim1/dim1 contraction against the dU ROW tile, so
    # no transpose is materialized; kept in f32 (only B rows -> MXU cost noise).
    h_dU = lax.dot_general(h, dU_ref[...], (((1,), (1,)), ((), ())),
                           preferred_element_type=f32)

    wxn = jnp.dot(x, wxn_ref[...], preferred_element_type=f32) + bxn_ref[...]
    whn = jnp.dot(h_m, whn_ref[...], preferred_element_type=f32) + bhn_ref[...]
    dv = wxn + r * (whn + jnp.abs(alpha_ref[...]) * h_dU)

    new_v = (1.0 - z) * v_ref[...] + z * dv
    # SaturatingPoisson: 1 - exp(-relu(v))   (exp goes to the EUP slot)
    new_h = 1.0 - jnp.exp(-jnp.maximum(new_v, 0.0))
    new_trace = (1.0 - z) * trace_ref[...] + z * r * new_h

    new_v_ref[...] = new_v
    new_h_ref[...] = new_h
    new_trace_ref[...] = new_trace


def _sgru_plastic_kernel(dU_ref, newh_t_ref, trace_t_ref, newh_ref, trace_ref,
                         new_dU_ref, *, mxu_dtype):
    """Pass B: STDP update of the plastic weights — one dU row tile."""
    f32 = jnp.float32
    newh_t = newh_t_ref[...].astype(mxu_dtype)     # (B, T)  column tile
    trace_t = trace_t_ref[...].astype(mxu_dtype)   # (B, T)
    newh = newh_ref[...].astype(mxu_dtype)         # (B, Hp) resident
    trace = trace_ref[...].astype(mxu_dtype)       # (B, Hp) resident
    # ddU row tile = new_h[:,tile]^T @ trace - trace[:,tile]^T @ new_h:
    # two dim0/dim0 MXU contractions (K = B) — no (Hp,Hp) transpose.
    m1 = lax.dot_general(newh_t, trace, (((0,), (0,)), ((), ())),
                         preferred_element_type=f32)
    m2 = lax.dot_general(trace_t, newh, (((0,), (0,)), ((), ())),
                         preferred_element_type=f32)
    new_dU_ref[...] = jnp.clip((1.0 - TAU_U) * dU_ref[...] + TAU_U * (m1 - m2),
                               -1.0, 1.0)


# ----------------------------------------------------------------------------
# Helpers (layout plumbing only — no re-implemented compute)
# ----------------------------------------------------------------------------
def _round_up(n, m):
    return ((n + m - 1) // m) * m


def _vmem_limit_bytes():
    """Scoped-VMEM ceiling derived from the chip (v7x has only 64 MiB physical)."""
    cap = 64 << 20                               # conservative fallback (v7x-sized)
    try:
        info = pltpu.get_tpu_info()
        cap = int(getattr(info, "vmem_capacity_bytes", cap))
    except Exception:
        pass
    return max(min(cap - (16 << 20), 100 << 20), 16 << 20)


def _pick_tile(Hp, mxu_dtype):
    """dU row-tile height: big enough to amortize DMA setup, small enough that
    double-buffered tiles stay well inside the per-generation scoped VMEM."""
    bpe = jnp.dtype(mxu_dtype).itemsize
    tile = 128
    for cand in (512, 256):
        if Hp % cand == 0:
            tile = cand
            break
    budget = _vmem_limit_bytes() // 2
    while tile > 128 and 2 * tile * Hp * (4 + 3 * bpe) > budget:
        tile //= 2
    return tile


def prepare_weights(params, *, use_bf16_matmul=True):
    """Per-gate split / transpose / pad / cast of the weights.
    Do this ONCE per sequence (hoist out of any lax.scan over timesteps)."""
    H = params["alpha"].shape[1]
    D_in = params["x2h_w"].shape[1]
    Hp = _round_up(H, LANE)
    pad = Hp - H
    mxu_dtype = jnp.bfloat16 if use_bf16_matmul else jnp.float32

    def gate(w, g):
        return w[g * H:(g + 1) * H, :]

    def pad_cols(a):
        return jnp.pad(a, ((0, 0), (0, pad))) if pad else a

    def pad_both(a):
        return jnp.pad(a, ((0, pad), (0, pad))) if pad else a

    x2h_w, h2h_w = params["x2h_w"], params["h2h_w"]
    x2h_b, h2h_b = params["x2h_b"], params["h2h_b"]

    wx = [pad_cols(gate(x2h_w, g).T).astype(mxu_dtype) for g in range(3)]   # (Din, Hp)
    wh = [pad_both(gate(h2h_w, g).T).astype(mxu_dtype) for g in range(3)]   # (Hp, Hp)

    def pad_vec(b):
        return pad_cols(b.reshape(1, H).astype(jnp.float32))

    return dict(
        wxz=wx[0], wxr=wx[1], wxn=wx[2],
        whz=wh[0], whr=wh[1], whn=wh[2],
        b_z=pad_vec(x2h_b[:H] + h2h_b[:H]),
        b_r=pad_vec(x2h_b[H:2 * H] + h2h_b[H:2 * H]),
        b_xn=pad_vec(x2h_b[2 * H:]),
        b_hn=pad_vec(h2h_b[2 * H:]),
        alpha=pad_cols(params["alpha"].astype(jnp.float32)),
    )


def pad_state(h, v, dU, trace, Hp):
    """Zero-pad the recurrent state once per sequence (padded lanes stay exactly
    zero through the whole recurrence, so keep it padded across a scan)."""
    pad = Hp - h.shape[1]
    if pad:
        h = jnp.pad(h, ((0, 0), (0, pad)))
        v = jnp.pad(v, ((0, 0), (0, pad)))
        trace = jnp.pad(trace, ((0, 0), (0, pad)))
        dU = jnp.pad(dU, ((0, pad), (0, pad)))
    return (h.astype(jnp.float32), v.astype(jnp.float32),
            dU.astype(jnp.float32), trace.astype(jnp.float32))


# ----------------------------------------------------------------------------
# One SGRU step on padded state (two gridded Pallas calls)
# ----------------------------------------------------------------------------
def sgru_step_padded(x, h, v, dU, trace, prep):
    B, D_in = x.shape
    Hp = h.shape[1]
    mxu_dtype = prep["wxz"].dtype
    tile = _pick_tile(Hp, mxu_dtype)
    grid = (Hp // tile,)
    cparams = pltpu.CompilerParams(
        dimension_semantics=("parallel",),
        vmem_limit_bytes=int(_vmem_limit_bytes()))

    x_m = x.astype(mxu_dtype)

    full = lambda j: (0, 0)      # resident (B, *) blocks
    col = lambda j: (0, j)       # hidden column tiles
    row = lambda j: (j, 0)       # dU row tiles

    # ---- pass A: gates / voltage / activation / trace ----------------------
    a_inputs = (x_m, h, v, trace, dU,
                prep["wxz"], prep["wxr"], prep["wxn"],
                prep["whz"], prep["whr"], prep["whn"],
                prep["b_z"], prep["b_r"], prep["b_xn"], prep["b_hn"],
                prep["alpha"])
    a_in_specs = [
        pl.BlockSpec((B, D_in), full),     # x (resident)
        pl.BlockSpec((B, Hp), full),       # h (resident)
        pl.BlockSpec((B, tile), col),      # v
        pl.BlockSpec((B, tile), col),      # trace
        pl.BlockSpec((tile, Hp), row),     # dU row tile
        pl.BlockSpec((D_in, tile), col),   # wxz
        pl.BlockSpec((D_in, tile), col),   # wxr
        pl.BlockSpec((D_in, tile), col),   # wxn
        pl.BlockSpec((Hp, tile), col),     # whz
        pl.BlockSpec((Hp, tile), col),     # whr
        pl.BlockSpec((Hp, tile), col),     # whn
        pl.BlockSpec((1, tile), col),      # b_z
        pl.BlockSpec((1, tile), col),      # b_r
        pl.BlockSpec((1, tile), col),      # b_xn
        pl.BlockSpec((1, tile), col),      # b_hn
        pl.BlockSpec((1, tile), col),      # alpha
    ]
    a_out_specs = (pl.BlockSpec((B, tile), col),) * 3
    a_out_shapes = (jax.ShapeDtypeStruct((B, Hp), jnp.float32),) * 3

    new_v, new_h, new_trace = pl.pallas_call(
        functools.partial(_sgru_state_kernel, mxu_dtype=mxu_dtype),
        grid=grid,
        in_specs=a_in_specs,
        out_specs=a_out_specs,
        out_shape=a_out_shapes,
        input_output_aliases={2: 0},       # v -> new_v in place (tile-matched)
        compiler_params=cparams,
    )(*a_inputs)

    # ---- pass B: STDP plastic-weight update (independent dU row tiles) -----
    b_in_specs = [
        pl.BlockSpec((tile, Hp), row),     # dU row tile
        pl.BlockSpec((B, tile), col),      # new_h column tile
        pl.BlockSpec((B, tile), col),      # trace column tile
        pl.BlockSpec((B, Hp), full),       # new_h (resident)
        pl.BlockSpec((B, Hp), full),       # trace (resident)
    ]
    new_dU = pl.pallas_call(
        functools.partial(_sgru_plastic_kernel, mxu_dtype=mxu_dtype),
        grid=grid,
        in_specs=b_in_specs,
        out_specs=pl.BlockSpec((tile, Hp), row),
        out_shape=jax.ShapeDtypeStruct((Hp, Hp), jnp.float32),
        input_output_aliases={0: 0},       # dU -> new_dU in place (the H^2 state)
        compiler_params=cparams,
    )(dU, new_h, trace, new_h, trace)

    return new_v, new_h, new_dU, new_trace


@functools.partial(jax.jit, static_argnames=("use_bf16_matmul",))
def sgru_cell_forward(x, h, v, dU, trace, params, *, use_bf16_matmul=True):
    """Convenience single-step wrapper (pads, runs the two Pallas calls, slices).
    For a scan, call prepare_weights/pad_state once and sgru_step_padded per step."""
    H = h.shape[1]
    prep = prepare_weights(params, use_bf16_matmul=use_bf16_matmul)
    Hp = prep["whz"].shape[0]
    h_p, v_p, dU_p, trace_p = pad_state(h, v, dU, trace, Hp)
    new_v, new_h, new_dU, new_trace = sgru_step_padded(x, h_p, v_p, dU_p,
                                                       trace_p, prep)
    if Hp != H:
        new_v = new_v[:, :H]
        new_h = new_h[:, :H]
        new_trace = new_trace[:, :H]
        new_dU = new_dU[:H, :H]
    return new_v, new_h, new_dU, new_trace


# ----------------------------------------------------------------------------
# Parameter init + pure-JAX reference (self-test)
# ----------------------------------------------------------------------------
def init_params(key, input_dim, hidden_dim):
    """Deterministic parameter init mirroring SGRUCell.reset_parameter shapes."""
    k1, k2, k3 = jax.random.split(key, 3)
    H = hidden_dim
    limit = math.sqrt(6.0 / (3 * H + input_dim))
    x2h_w = jax.random.uniform(k1, (3 * H, input_dim), jnp.float32, -limit, limit)
    blocks = []
    for kk in jax.random.split(k2, 3):
        a = jax.random.normal(kk, (H, H), jnp.float32)
        q, _ = jnp.linalg.qr(a)
        blocks.append(q)
    h2h_w = jnp.concatenate(blocks, axis=0)
    bias = jnp.zeros((3 * H,), jnp.float32).at[:2 * H].set(3.0)
    alpha = jax.random.uniform(k3, (1, H), jnp.float32) * math.sqrt(1.0 / H)
    return {"x2h_w": x2h_w, "x2h_b": bias, "h2h_w": h2h_w, "h2h_b": bias,
            "alpha": alpha}


def reference_forward(x, h, v, dU, trace, params):
    """Pure-JAX reference (mirrors the PyTorch forward exactly, f32 matmuls)."""
    H = h.shape[1]
    hi = lax.Precision.HIGHEST
    Wx = jnp.dot(x, params["x2h_w"].T, precision=hi) + params["x2h_b"]
    Wh = jnp.dot(h, params["h2h_w"].T, precision=hi) + params["h2h_b"]
    z = jax.nn.sigmoid(Wx[:, :H] + Wh[:, :H])
    r = jax.nn.sigmoid(Wx[:, H:2 * H] + Wh[:, H:2 * H])
    dv = Wx[:, 2 * H:] + r * (Wh[:, 2 * H:] + jnp.abs(params["alpha"])
                              * jnp.dot(h, dU.T, precision=hi))
    new_v = (1 - z) * v + z * dv
    new_h = 1 - jnp.exp(-jnp.maximum(new_v, 0.0))
    ddU = (jnp.dot(new_h.T, trace, precision=hi)
           - jnp.dot(trace.T, new_h, precision=hi))
    new_trace = (1 - z) * trace + z * r * new_h
    new_dU = jnp.clip((1 - TAU_U) * dU + TAU_U * ddU, -1.0, 1.0)
    return new_v, new_h, new_dU, new_trace


if __name__ == "__main__":
    # (B, D_in, H): lane-aligned single-tile, padded small-H, and multi-tile grid.
    configs = [(8, 32, 128), (2, 16, 32), (4, 24, 384)]
    key = jax.random.PRNGKey(0)

    for (B, D_IN, H) in configs:
        key, kp, kx, kh, kv, kd, kt = jax.random.split(key, 7)
        params = init_params(kp, D_IN, H)
        x = jax.random.normal(kx, (B, D_IN), jnp.float32)
        h = jax.random.uniform(kh, (B, H), jnp.float32)
        v = jax.random.normal(kv, (B, H), jnp.float32) * 0.1
        dU = jax.random.normal(kd, (H, H), jnp.float32) * 0.05
        trace = jax.random.uniform(kt, (B, H), jnp.float32)

        refs = reference_forward(x, h, v, dU, trace, params)

        # Exact path (f32 MXU) — tight tolerance (test-only path on v5e).
        outs = jax.block_until_ready(
            sgru_cell_forward(x, h, v, dU, trace, params, use_bf16_matmul=False))
        for o, r in zip(outs, refs):
            assert o.shape == r.shape and o.dtype == r.dtype
            assert jnp.allclose(o, r, atol=1e-4, rtol=1e-4), "f32 path mismatch"

        # Fast path (bf16 MXU, f32 accumulate) — loosened tolerance.
        outs = jax.block_until_ready(
            sgru_cell_forward(x, h, v, dU, trace, params, use_bf16_matmul=True))
        for o, r in zip(outs, refs):
            assert o.shape == r.shape and o.dtype == r.dtype
            assert jnp.allclose(o, r, atol=5e-2, rtol=5e-2), "bf16 path mismatch"

    print("KERNEL_OK")
</pallas_src>

<mosaic_0001>
module attributes {stable_mosaic.version = 11 : i64} {
  func.func @_sgru_plastic_kernel(%arg0: i32, %arg1: memref<128x128xf32, #tpu.memory_space<vmem>>, %arg2: memref<8x128xf32, #tpu.memory_space<vmem>>, %arg3: memref<8x128xf32, #tpu.memory_space<vmem>>, %arg4: memref<8x128xf32, #tpu.memory_space<vmem>>, %arg5: memref<8x128xf32, #tpu.memory_space<vmem>>, %arg6: memref<128x128xf32, #tpu.memory_space<vmem>>) attributes {dimension_semantics = [#tpu.dimension_semantics<parallel>], iteration_bounds = array<i64: 1>, scalar_prefetch = 0 : i64, scratch_operands = 0 : i64, tpu.core_type = #tpu.core_type<tc>, window_params = [{transform_indices = @transform_0, window_bounds = array<i64: 128, 128>}, {transform_indices = @transform_1, window_bounds = array<i64: 8, 128>}, {transform_indices = @transform_2, window_bounds = array<i64: 8, 128>}, {pipeline_mode = #tpu.pipeline_mode<synchronous>, transform_indices = @transform_3, window_bounds = array<i64: 8, 128>}, {pipeline_mode = #tpu.pipeline_mode<synchronous>, transform_indices = @transform_4, window_bounds = array<i64: 8, 128>}, {transform_indices = @transform_5, window_bounds = array<i64: 128, 128>}]} {
    %c0 = arith.constant 0 : index
    %c0_0 = arith.constant 0 : index
    %0 = vector.load %arg2[%c0, %c0_0] : memref<8x128xf32, #tpu.memory_space<vmem>>, vector<8x128xf32>
    %c0_1 = arith.constant 0 : index
    %c0_2 = arith.constant 0 : index
    %1 = vector.load %arg3[%c0_1, %c0_2] : memref<8x128xf32, #tpu.memory_space<vmem>>, vector<8x128xf32>
    %c0_3 = arith.constant 0 : index
    %c0_4 = arith.constant 0 : index
    %2 = vector.load %arg4[%c0_3, %c0_4] : memref<8x128xf32, #tpu.memory_space<vmem>>, vector<8x128xf32>
    %c0_5 = arith.constant 0 : index
    %c0_6 = arith.constant 0 : index
    %3 = vector.load %arg5[%c0_5, %c0_6] : memref<8x128xf32, #tpu.memory_space<vmem>>, vector<8x128xf32>
    %cst = arith.constant dense<0.000000e+00> : vector<128x128xf32>
    %4 = tpu.matmul %0, %3, %cst {dimension_numbers = #tpu.dot_dimension_numbers<[0], [0], [1], [1], [0, 1, 1, 1], [], []>} : vector<8x128xf32>, vector<8x128xf32>, vector<128x128xf32> -> vector<128x128xf32>
    %cst_7 = arith.constant dense<0.000000e+00> : vector<128x128xf32>
    %5 = tpu.matmul %1, %2, %cst_7 {dimension_numbers = #tpu.dot_dimension_numbers<[0], [0], [1], [1], [0, 1, 1, 1], [], []>} : vector<8x128xf32>, vector<8x128xf32>, vector<128x128xf32> -> vector<128x128xf32>
    %c0_8 = arith.constant 0 : index
    %c0_9 = arith.constant 0 : index
    %6 = vector.load %arg1[%c0_8, %c0_9] : memref<128x128xf32, #tpu.memory_space<vmem>>, vector<128x128xf32>
    %cst_10 = arith.constant 9.900000e-01 : f32
    %7 = vector.broadcast %cst_10 : f32 to vector<128x128xf32>
    %8 = arith.mulf %7, %6 : vector<128x128xf32>
    %9 = arith.subf %4, %5 : vector<128x128xf32>
    %cst_11 = arith.constant 0.00999999977 : f32
    %10 = vector.broadcast %cst_11 : f32 to vector<128x128xf32>
    %11 = arith.mulf %10, %9 : vector<128x128xf32>
    %12 = arith.addf %8, %11 : vector<128x128xf32>
    %cst_12 = arith.constant -1.000000e+00 : f32
    %cst_13 = arith.constant 1.000000e+00 : f32
    %13 = vector.broadcast %cst_12 : f32 to vector<128x128xf32>
    %14 = arith.maximumf %13, %12 : vector<128x128xf32>
    %15 = vector.broadcast %cst_13 : f32 to vector<128x128xf32>
    %16 = arith.minimumf %15, %14 : vector<128x128xf32>
    %c0_14 = arith.constant 0 : index
    %c0_15 = arith.constant 0 : index
    %17 = vector.load %arg6[%c0_14, %c0_15] : memref<128x128xf32, #tpu.memory_space<vmem>>, vector<128x128xf32>
    tpu.vector_store %arg6[%c0_14, %c0_15], %16 {strides = array<i32>} : memref<128x128xf32, #tpu.memory_space<vmem>>, vector<128x128xf32>,
    return
  }
  func.func @transform_0(%arg0: i32) -> (i32, i32) {
    %c0_i32 = arith.constant 0 : i32
    %c0_i32_0 = arith.constant 0 : i32
    return %arg0, %c0_i32 : i32, i32
  }
  func.func @transform_1(%arg0: i32) -> (i32, i32) {
    %c0_i32 = arith.constant 0 : i32
    %c0_i32_0 = arith.constant 0 : i32
    return %c0_i32, %arg0 : i32, i32
  }
  func.func @transform_2(%arg0: i32) -> (i32, i32) {
    %c0_i32 = arith.constant 0 : i32
    %c0_i32_0 = arith.constant 0 : i32
    return %c0_i32, %arg0 : i32, i32
  }
  func.func @transform_3(%arg0: i32) -> (i32, i32) {
    %c0_i32 = arith.constant 0 : i32
    %c0_i32_0 = arith.constant 0 : i32
    %c0_i32_1 = arith.constant 0 : i32
    return %c0_i32, %c0_i32_0 : i32, i32
  }
  func.func @transform_4(%arg0: i32) -> (i32, i32) {
    %c0_i32 = arith.constant 0 : i32
    %c0_i32_0 = arith.constant 0 : i32
    %c0_i32_1 = arith.constant 0 : i32
    return %c0_i32, %c0_i32_0 : i32, i32
  }
  func.func @transform_5(%arg0: i32) -> (i32, i32) {
    %c0_i32 = arith.constant 0 : i32
    %c0_i32_0 = arith.constant 0 : i32
    return %arg0, %c0_i32 : i32, i32
  }
}

module attributes {stable_mosaic.version = 11 : i64} {
  func.func @_sgru_state_kernel(%arg0: i32, %arg1: memref<8x32xf32, #tpu.memory_space<vmem>>, %arg2: memref<8x128xf32, #tpu.memory_space<vmem>>, %arg3: memref<8x128xf32, #tpu.memory_space<vmem>>, %arg4: memref<8x128xf32, #tpu.memory_space<vmem>>, %arg5: memref<128x128xf32, #tpu.memory_space<vmem>>, %arg6: memref<32x128xf32, #tpu.memory_space<vmem>>, %arg7: memref<32x128xf32, #tpu.memory_space<vmem>>, %arg8: memref<32x128xf32, #tpu.memory_space<vmem>>, %arg9: memref<128x128xf32, #tpu.memory_space<vmem>>, %arg10: memref<128x128xf32, #tpu.memory_space<vmem>>, %arg11: memref<128x128xf32, #tpu.memory_space<vmem>>, %arg12: memref<1x128xf32, #tpu.memory_space<vmem>>, %arg13: memref<1x128xf32, #tpu.memory_space<vmem>>, %arg14: memref<1x128xf32, #tpu.memory_space<vmem>>, %arg15: memref<1x128xf32, #tpu.memory_space<vmem>>, %arg16: memref<1x128xf32, #tpu.memory_space<vmem>>, %arg17: memref<8x128xf32, #tpu.memory_space<vmem>>, %arg18: memref<8x128xf32, #tpu.memory_space<vmem>>, %arg19: memref<8x128xf32, #tpu.memory_space<vmem>>) attributes {dimension_semantics = [#tpu.dimension_semantics<parallel>], iteration_bounds = array<i64: 1>, scalar_prefetch = 0 : i64, scratch_operands = 0 : i64, tpu.core_type = #tpu.core_type<tc>, window_params = [{pipeline_mode = #tpu.pipeline_mode<synchronous>, transform_indices = @transform_0, window_bounds = array<i64: 8, 32>}, {pipeline_mode = #tpu.pipeline_mode<synchronous>, transform_indices = @transform_1, window_bounds = array<i64: 8, 128>}, {transform_indices = @transform_2, window_bounds = array<i64: 8, 128>}, {transform_indices = @transform_3, window_bounds = array<i64: 8, 128>}, {transform_indices = @transform_4, window_bounds = array<i64: 128, 128>}, {transform_indices = @transform_5, window_bounds = array<i64: 32, 128>}, {transform_indices = @transform_6, window_bounds = array<i64: 32, 128>}, {transform_indices = @transform_7, window_bounds = array<i64: 32, 128>}, {transform_indices = @transform_8, window_bounds = array<i64: 128, 128>}, {transform_indices = @transform_9, window_bounds = array<i64: 128, 128>}, {transform_indices = @transform_10, window_bounds = array<i64: 128, 128>}, {transform_indices = @transform_11, window_bounds = array<i64: 1, 128>}, {transform_indices = @transform_12, window_bounds = array<i64: 1, 128>}, {transform_indices = @transform_13, window_bounds = array<i64: 1, 128>}, {transform_indices = @transform_14, window_bounds = array<i64: 1, 128>}, {transform_indices = @transform_15, window_bounds = array<i64: 1, 128>}, {transform_indices = @transform_16, window_bounds = array<i64: 8, 128>}, {transform_indices = @transform_17, window_bounds = array<i64: 8, 128>}, {transform_indices = @transform_18, window_bounds = array<i64: 8, 128>}]} {
    %c0 = arith.constant 0 : index
    %c0_0 = arith.constant 0 : index
    %0 = vector.load %arg1[%c0, %c0_0] : memref<8x32xf32, #tpu.memory_space<vmem>>, vector<8x32xf32>
    %c0_1 = arith.constant 0 : index
    %c0_2 = arith.constant 0 : index
    %1 = vector.load %arg2[%c0_1, %c0_2] : memref<8x128xf32, #tpu.memory_space<vmem>>, vector<8x128xf32>
    %c0_3 = arith.constant 0 : index
    %c0_4 = arith.constant 0 : index
    %2 = vector.load %arg6[%c0_3, %c0_4] : memref<32x128xf32, #tpu.memory_space<vmem>>, vector<32x128xf32>
    %cst = arith.constant dense<0.000000e+00> : vector<8x128xf32>
    %3 = tpu.matmul %0, %2, %cst {dimension_numbers = #tpu.dot_dimension_numbers<[1], [0], [0], [1], [0, 0, 1, 1], [], []>} : vector<8x32xf32>, vector<32x128xf32>, vector<8x128xf32> -> vector<8x128xf32>
    %c0_5 = arith.constant 0 : index
    %c0_6 = arith.constant 0 : index
    %4 = vector.load %arg9[%c0_5, %c0_6] : memref<128x128xf32, #tpu.memory_space<vmem>>, vector<128x128xf32>
    %cst_7 = arith.constant dense<0.000000e+00> : vector<8x128xf32>
    %5 = tpu.matmul %1, %4, %cst_7 {dimension_numbers = #tpu.dot_dimension_numbers<[1], [0], [0], [1], [0, 0, 1, 1], [], []>} : vector<8x128xf32>, vector<128x128xf32>, vector<8x128xf32> -> vector<8x128xf32>
    %6 = arith.addf %3, %5 : vector<8x128xf32>
    %c0_8 = arith.constant 0 : index
    %c0_9 = arith.constant 0 : index
    %7 = vector.load %arg12[%c0_8, %c0_9] : memref<1x128xf32, #tpu.memory_space<vmem>>, vector<1x128xf32>
    %8 = vector.broadcast %7 : vector<1x128xf32> to vector<8x128xf32>
    %9 = arith.addf %6, %8 : vector<8x128xf32>
    %c0_10 = arith.constant 0 : index
    %c0_11 = arith.constant 0 : index
    %10 = vector.load %arg7[%c0_10, %c0_11] : memref<32x128xf32, #tpu.memory_space<vmem>>, vector<32x128xf32>
    %cst_12 = arith.constant dense<0.000000e+00> : vector<8x128xf32>
    %11 = tpu.matmul %0, %10, %cst_12 {dimension_numbers = #tpu.dot_dimension_numbers<[1], [0], [0], [1], [0, 0, 1, 1], [], []>} : vector<8x32xf32>, vector<32x128xf32>, vector<8x128xf32> -> vector<8x128xf32>
    %c0_13 = arith.constant 0 : index
    %c0_14 = arith.constant 0 : index
    %12 = vector.load %arg10[%c0_13, %c0_14] : memref<128x128xf32, #tpu.memory_space<vmem>>, vector<128x128xf32>
    %cst_15 = arith.constant dense<0.000000e+00> : vector<8x128xf32>
    %13 = tpu.matmul %1, %12, %cst_15 {dimension_numbers = #tpu.dot_dimension_numbers<[1], [0], [0], [1], [0, 0, 1, 1], [], []>} : vector<8x128xf32>, vector<128x128xf32>, vector<8x128xf32> -> vector<8x128xf32>
    %14 = arith.addf %11, %13 : vector<8x128xf32>
    %c0_16 = arith.constant 0 : index
    %c0_17 = arith.constant 0 : index
    %15 = vector.load %arg13[%c0_16, %c0_17] : memref<1x128xf32, #tpu.memory_space<vmem>>, vector<1x128xf32>
    %16 = vector.broadcast %15 : vector<1x128xf32> to vector<8x128xf32>
    %17 = arith.addf %14, %16 : vector<8x128xf32>
    %18 = arith.negf %9 : vector<8x128xf32>
    %19 = math.exp %18 : vector<8x128xf32>
    %cst_18 = arith.constant 1.000000e+00 : f32
    %20 = vector.broadcast %cst_18 : f32 to vector<8x128xf32>
    %21 = arith.addf %20, %19 : vector<8x128xf32>
    %22 = arith.divf %20, %21 : vector<8x128xf32>
    %23 = arith.negf %17 : vector<8x128xf32>
    %24 = math.exp %23 : vector<8x128xf32>
    %cst_19 = arith.constant 1.000000e+00 : f32
    %25 = vector.broadcast %cst_19 : f32 to vector<8x128xf32>
    %26 = arith.addf %25, %24 : vector<8x128xf32>
    %27 = arith.divf %25, %26 : vector<8x128xf32>
    %c0_20 = arith.constant 0 : index
    %c0_21 = arith.constant 0 : index
    %28 = vector.load %arg5[%c0_20, %c0_21] : memref<128x128xf32, #tpu.memory_space<vmem>>, vector<128x128xf32>
    %cst_22 = arith.constant dense<0.000000e+00> : vector<8x128xf32>
    %29 = tpu.matmul %1, %28, %cst_22 {dimension_numbers = #tpu.dot_dimension_numbers<[1], [1], [0], [0], [0, 0, 1, 0], [], []>} : vector<8x128xf32>, vector<128x128xf32>, vector<8x128xf32> -> vector<8x128xf32>
    %c0_23 = arith.constant 0 : index
    %c0_24 = arith.constant 0 : index
    %30 = vector.load %arg8[%c0_23, %c0_24] : memref<32x128xf32, #tpu.memory_space<vmem>>, vector<32x128xf32>
    %cst_25 = arith.constant dense<0.000000e+00> : vector<8x128xf32>
    %31 = tpu.matmul %0, %30, %cst_25 {dimension_numbers = #tpu.dot_dimension_numbers<[1], [0], [0], [1], [0, 0, 1, 1], [], []>} : vector<8x32xf32>, vector<32x128xf32>, vector<8x128xf32> -> vector<8x128xf32>
    %c0_26 = arith.constant 0 : index
    %c0_27 = arith.constant 0 : index
    %32 = vector.load %arg14[%c0_26, %c0_27] : memref<1x128xf32, #tpu.memory_space<vmem>>, vector<1x128xf32>
    %33 = vector.broadcast %32 : vector<1x128xf32> to vector<8x128xf32>
    %34 = arith.addf %31, %33 : vector<8x128xf32>
    %c0_28 = arith.constant 0 : index
    %c0_29 = arith.constant 0 : index
    %35 = vector.load %arg11[%c0_28, %c0_29] : memref<128x128xf32, #tpu.memory_space<vmem>>, vector<128x128xf32>
    %cst_30 = arith.constant dense<0.000000e+00> : vector<8x128xf32>
    %36 = tpu.matmul %1, %35, %cst_30 {dimension_numbers = #tpu.dot_dimension_numbers<[1], [0], [0], [1], [0, 0, 1, 1], [], []>} : vector<8x128xf32>, vector<128x128xf32>, vector<8x128xf32> -> vector<8x128xf32>
    %c0_31 = arith.constant 0 : index
    %c0_32 = arith.constant 0 : index
    %37 = vector.load %arg15[%c0_31, %c0_32] : memref<1x128xf32, #tpu.memory_space<vmem>>, vector<1x128xf32>
    %38 = vector.broadcast %37 : vector<1x128xf32> to vector<8x128xf32>
    %39 = arith.addf %36, %38 : vector<8x128xf32>
    %c0_33 = arith.constant 0 : index
    %c0_34 = arith.constant 0 : index
    %40 = vector.load %arg16[%c0_33, %c0_34] : memref<1x128xf32, #tpu.memory_space<vmem>>, vector<1x128xf32>
    %41 = math.absf %40 : vector<1x128xf32>
    %42 = vector.broadcast %41 : vector<1x128xf32> to vector<8x128xf32>
    %43 = arith.mulf %42, %29 : vector<8x128xf32>
    %44 = arith.addf %39, %43 : vector<8x128xf32>
    %45 = arith.mulf %27, %44 : vector<8x128xf32>
    %46 = arith.addf %34, %45 : vector<8x128xf32>
    %cst_35 = arith.constant 1.000000e+00 : f32
    %47 = vector.broadcast %cst_35 : f32 to vector<8x128xf32>
    %48 = arith.subf %47, %22 : vector<8x128xf32>
    %c0_36 = arith.constant 0 : index
    %c0_37 = arith.constant 0 : index
    %49 = vector.load %arg3[%c0_36, %c0_37] : memref<8x128xf32, #tpu.memory_space<vmem>>, vector<8x128xf32>
    %50 = arith.mulf %48, %49 : vector<8x128xf32>
    %51 = arith.mulf %22, %46 : vector<8x128xf32>
    %52 = arith.addf %50, %51 : vector<8x128xf32>
    %cst_38 = arith.constant 0.000000e+00 : f32
    %53 = vector.broadcast %cst_38 : f32 to vector<8x128xf32>
    %54 = arith.maximumf %52, %53 : vector<8x128xf32>
    %cst_39 = arith.constant 0.000000e+00 : f32
    %55 = vector.broadcast %cst_39 : f32 to vector<8x128xf32>
    %56 = arith.subf %55, %54 : vector<8x128xf32>
    %57 = math.exp %56 : vector<8x128xf32>
    %cst_40 = arith.constant 1.000000e+00 : f32
    %58 = vector.broadcast %cst_40 : f32 to vector<8x128xf32>
    %59 = arith.subf %58, %57 : vector<8x128xf32>
    %cst_41 = arith.constant 1.000000e+00 : f32
    %60 = vector.broadcast %cst_41 : f32 to vector<8x128xf32>
    %61 = arith.subf %60, %22 : vector<8x128xf32>
    %c0_42 = arith.constant 0 : index
    %c0_43 = arith.constant 0 : index
    %62 = vector.load %arg4[%c0_42, %c0_43] : memref<8x128xf32, #tpu.memory_space<vmem>>, vector<8x128xf32>
    %63 = arith.mulf %61, %62 : vector<8x128xf32>
    %64 = arith.mulf %22, %27 : vector<8x128xf32>
    %65 = arith.mulf %64, %59 : vector<8x128xf32>
    %66 = arith.addf %63, %65 : vector<8x128xf32>
    %c0_44 = arith.constant 0 : index
    %c0_45 = arith.constant 0 : index
    %67 = vector.load %arg17[%c0_44, %c0_45] : memref<8x128xf32, #tpu.memory_space<vmem>>, vector<8x128xf32>
    tpu.vector_store %arg17[%c0_44, %c0_45], %52 {strides = array<i32>} : memref<8x128xf32, #tpu.memory_space<vmem>>, vector<8x128xf32>,
    %c0_46 = arith.constant 0 : index
    %c0_47 = arith.constant 0 : index
    %68 = vector.load %arg18[%c0_46, %c0_47] : memref<8x128xf32, #tpu.memory_space<vmem>>, vector<8x128xf32>
    tpu.vector_store %arg18[%c0_46, %c0_47], %59 {strides = array<i32>} : memref<8x128xf32, #tpu.memory_space<vmem>>, vector<8x128xf32>,
    %c0_48 = arith.constant 0 : index
    %c0_49 = arith.constant 0 : index
    %69 = vector.load %arg19[%c0_48, %c0_49] : memref<8x128xf32, #tpu.memory_space<vmem>>, vector<8x128xf32>
    tpu.vector_store %arg19[%c0_48, %c0_49], %66 {strides = array<i32>} : memref<8x128xf32, #tpu.memory_space<vmem>>, vector<8x128xf32>,
    return
  }
  func.func @transform_0(%arg0: i32) -> (i32, i32) {
    %c0_i32 = arith.constant 0 : i32
    %c0_i32_0 = arith.constant 0 : i32
    %c0_i32_1 = arith.constant 0 : i32
    return %c0_i32, %c0_i32_0 : i32, i32
  }
  func.func @transform_1(%arg0: i32) -> (i32, i32) {
    %c0_i32 = arith.constant 0 : i32
    %c0_i32_0 = arith.constant 0 : i32
    %c0_i32_1 = arith.constant 0 : i32
    return %c0_i32, %c0_i32_0 : i32, i32
  }
  func.func @transform_2(%arg0: i32) -> (i32, i32) {
    %c0_i32 = arith.constant 0 : i32
    %c0_i32_0 = arith.constant 0 : i32
    return %c0_i32, %arg0 : i32, i32
  }
  func.func @transform_3(%arg0: i32) -> (i32, i32) {
    %c0_i32 = arith.constant 0 : i32
    %c0_i32_0 = arith.constant 0 : i32
    return %c0_i32, %arg0 : i32, i32
  }
  func.func @transform_4(%arg0: i32) -> (i32, i32) {
    %c0_i32 = arith.constant 0 : i32
    %c0_i32_0 = arith.constant 0 : i32
    return %arg0, %c0_i32 : i32, i32
  }
  func.func @transform_5(%arg0: i32) -> (i32, i32) {
    %c0_i32 = arith.constant 0 : i32
    %c0_i32_0 = arith.constant 0 : i32
    return %c0_i32, %arg0 : i32, i32
  }
  func.func @transform_6(%arg0: i32) -> (i32, i32) {
    %c0_i32 = arith.constant 0 : i32
    %c0_i32_0 = arith.constant 0 : i32
    return %c0_i32, %arg0 : i32, i32
  }
  func.func @transform_7(%arg0: i32) -> (i32, i32) {
    %c0_i32 = arith.constant 0 : i32
    %c0_i32_0 = arith.constant 0 : i32
    return %c0_i32, %arg0 : i32, i32
  }
  func.func @transform_8(%arg0: i32) -> (i32, i32) {
    %c0_i32 = arith.constant 0 : i32
    %c0_i32_0 = arith.constant 0 : i32
    return %c0_i32, %arg0 : i32, i32
  }
  func.func @transform_9(%arg0: i32) -> (i32, i32) {
    %c0_i32 = arith.constant 0 : i32
    %c0_i32_0 = arith.constant 0 : i32
    return %c0_i32, %arg0 : i32, i32
  }
  func.func @transform_10(%arg0: i32) -> (i32, i32) {
    %c0_i32 = arith.constant 0 : i32
    %c0_i32_0 = arith.constant 0 : i32
    return %c0_i32, %arg0 : i32, i32
  }
  func.func @transform_11(%arg0: i32) -> (i32, i32) {
    %c0_i32 = arith.constant 0 : i32
    %c0_i32_0 = arith.constant 0 : i32
    return %c0_i32, %arg0 : i32, i32
  }
  func.func @transform_12(%arg0: i32) -> (i32, i32) {
    %c0_i32 = arith.constant 0 : i32
    %c0_i32_0 = arith.constant 0 : i32
    return %c0_i32, %arg0 : i32, i32
  }
  func.func @transform_13(%arg0: i32) -> (i32, i32) {
    %c0_i32 = arith.constant 0 : i32
    %c0_i32_0 = arith.constant 0 : i32
    return %c0_i32, %arg0 : i32, i32
  }
  func.func @transform_14(%arg0: i32) -> (i32, i32) {
    %c0_i32 = arith.constant 0 : i32
    %c0_i32_0 = arith.constant 0 : i32
    return %c0_i32, %arg0 : i32, i32
  }
  func.func @transform_15(%arg0: i32) -> (i32, i32) {
    %c0_i32 = arith.constant 0 : i32
    %c0_i32_0 = arith.constant 0 : i32
    return %c0_i32, %arg0 : i32, i32
  }
  func.func @transform_16(%arg0: i32) -> (i32, i32) {
    %c0_i32 = arith.constant 0 : i32
    %c0_i32_0 = arith.constant 0 : i32
    return %c0_i32, %arg0 : i32, i32
  }
  func.func @transform_17(%arg0: i32) -> (i32, i32) {
    %c0_i32 = arith.constant 0 : i32
    %c0_i32_0 = arith.constant 0 : i32
    return %c0_i32, %arg0 : i32, i32
  }
  func.func @transform_18(%arg0: i32) -> (i32, i32) {
    %c0_i32 = arith.constant 0 : i32
    %c0_i32_0 = arith.constant 0 : i32
    return %c0_i32, %arg0 : i32, i32
  }
}

</mosaic_0001>

<llo_original>
// kernel: sgru_cell_forward.3
$region0: #{sgru_cell_forward.3}
  #allocation0 [shape = 'u32[]', space=smem, size = 0x4, offset = 0x4, fixed_abs, tag = 'smem constant byte address 0x4 - core index']
  #allocation1 [shape = 'u32[72,128]{1,0:T(1,128)}', space=vmem, size = 0x9000, scoped, tag = 'internal scratch']
  %s0 = inlined_call_operand.vmem [shape: f32[128,128], index: 0, kind: input, shape index: {}, may-alias: {0,5}]
  %s1 = inlined_call_operand.vmem [shape: f32[8,128], index: 1, kind: input, shape index: {}, may-alias: {1,3}]
  %s2 = inlined_call_operand.vmem [shape: f32[8,128], index: 2, kind: input, shape index: {}, may-alias: {2,4}]
  %s3 = inlined_call_operand.vmem [shape: f32[8,128], index: 3, kind: input, shape index: {}, may-alias: {1,3}]
  %s4 = inlined_call_operand.vmem [shape: f32[8,128], index: 4, kind: input, shape index: {}, may-alias: {2,4}]
  %s5 = inlined_call_operand.vmem [shape: f32[128,128], index: 5, kind: output, shape index: {}, may-alias: {0,5}]
  %s6 = sld [smem:[#allocation0]]
  $region30: #{sgru_cell_forward.3} parent=0
    _
  %s8 = ssub.s32 1, %s6
  %s9 = scalar_select 0, %s8, %s6
  // Predicated region
  $region2: #{sgru_cell_forward.3} parent=0 // pred_check
    _
  $region3: #{sgru_cell_forward.3} parent=0 // pred_check_branch
    %11 = sbr.rel (0) target = $region5
  $region4: #{sgru_cell_forward.3} parent=0 // pred_region
    _
  $region5: #{sgru_cell_forward.3} parent=0 // pred_fallthru
    _
  // Predicated region
  $region6: #{sgru_cell_forward.3} parent=0 // pred_check
    _
  $region7: #{sgru_cell_forward.3} parent=0 // pred_check_branch
    %13 = sbr.rel (0) target = $region9
  $region8: #{sgru_cell_forward.3} parent=0 // pred_region
    _
  $region9: #{sgru_cell_forward.3} parent=0 // pred_fallthru
    _
  // Predicated region
  $region10: #{sgru_cell_forward.3} parent=0 // pred_check
    _
  $region11: #{sgru_cell_forward.3} parent=0 // pred_check_branch
    %15 = sbr.rel (0) target = $region13
  $region12: #{sgru_cell_forward.3} parent=0 // pred_region
    _
  $region13: #{sgru_cell_forward.3} parent=0 // pred_fallthru
    _
  // Predicated region
  $region14: #{sgru_cell_forward.3} parent=0 // pred_check
    _
  $region15: #{sgru_cell_forward.3} parent=0 // pred_check_branch
    %17 = sbr.rel (0) target = $region17
  $region16: #{sgru_cell_forward.3} parent=0 // pred_region
    _
  $region17: #{sgru_cell_forward.3} parent=0 // pred_fallthru
    _
  // Predicated region
  $region18: #{sgru_cell_forward.3} parent=0 // pred_check
    _
  $region19: #{sgru_cell_forward.3} parent=0 // pred_check_branch
    %19 = sbr.rel (0) target = $region21
  $region20: #{sgru_cell_forward.3} parent=0 // pred_region
    _
  $region21: #{sgru_cell_forward.3} parent=0 // pred_fallthru
    _
  %v20 = vld [vmem:[%s1] sm:$0xff]
  %v21 = vld [vmem:[%s2] sm:$0xff]
  %v22 = vld [vmem:[%s3] sm:$0xff]
  %v23 = vld [vmem:[%s4] sm:$0xff]
  %24 = vxpose.xlu0.b32.start [1/16] %v20, 128
  %25 = vxpose.xlu0.b32.cont [2/16] 0.0, 128
  %26 = vxpose.xlu0.b32.cont [3/16] 0.0, 128
  %27 = vxpose.xlu0.b32.cont [4/16] 0.0, 128
  %28 = vxpose.xlu0.b32.cont [5/16] 0.0, 128
  %29 = vxpose.xlu0.b32.cont [6/16] 0.0, 128
  %30 = vxpose.xlu0.b32.cont [7/16] 0.0, 128
  %31 = vxpose.xlu0.b32.cont [8/16] 0.0, 128
  %32 = vxpose.xlu0.b32.cont [9/16] 0.0, 128
  %33 = vxpose.xlu0.b32.cont [10/16] 0.0, 128
  %34 = vxpose.xlu0.b32.cont [11/16] 0.0, 128
  %35 = vxpose.xlu0.b32.cont [12/16] 0.0, 128
  %36 = vxpose.xlu0.b32.cont [13/16] 0.0, 128
  %37 = vxpose.xlu0.b32.cont [14/16] 0.0, 128
  %38 = vxpose.xlu0.b32.cont [15/16] 0.0, 128
  %39 = vxpose.xlu0.b32.end [16/16] 0.0, 128
  %v40 = vpop.trf.xlu0
  %v41 = vpop.trf.xlu0
  %v42 = vpop.trf.xlu0
  %v43 = vpop.trf.xlu0
  %v44 = vpop.trf.xlu0
  %v45 = vpop.trf.xlu0
  %v46 = vpop.trf.xlu0
  %v47 = vpop.trf.xlu0
  %v48 = vpop.trf.xlu0
  %v49 = vpop.trf.xlu0
  %v50 = vpop.trf.xlu0
  %v51 = vpop.trf.xlu0
  %v52 = vpop.trf.xlu0
  %v53 = vpop.trf.xlu0
  %v54 = vpop.trf.xlu0
  %v55 = vpop.trf.xlu0
  %vm56 = vcmask 64512
  %v58 = vsel %vm56, %v40, 0
  %v61 = vsel %vm56, %v41, 0
  %v64 = vsel %vm56, %v42, 0
  %v67 = vsel %vm56, %v43, 0
  %v70 = vsel %vm56, %v44, 0
  %v73 = vsel %vm56, %v45, 0
  %v76 = vsel %vm56, %v46, 0
  %v79 = vsel %vm56, %v47, 0
  %v82 = vsel %vm56, %v48, 0
  %v85 = vsel %vm56, %v49, 0
  %v88 = vsel %vm56, %v50, 0
  %v91 = vsel %vm56, %v51, 0
  %v94 = vsel %vm56, %v52, 0
  %v97 = vsel %vm56, %v53, 0
  %v100 = vsel %vm56, %v54, 0
  %v103 = vsel %vm56, %v55, 0
  %105 = vmatpush.msra.mxu0 0.0
  %106 = vmatpush.msra.mxu0 0.0
  %107 = vmatpush.msra.mxu0 0.0
  %108 = vmatpush.msra.mxu0 0.0
  %109 = vmatpush.msra.mxu0 0.0
  %110 = vmatpush.msra.mxu0 0.0
  %111 = vmatpush.msra.mxu0 0.0
  %112 = vmatpush.msra.mxu0 0.0
  %113 = vmatpush.msra.mxu0 0.0
  %114 = vmatpush.msra.mxu0 0.0
  %115 = vmatpush.msra.mxu0 0.0
  %116 = vmatpush.msra.mxu0 0.0
  %117 = vmatpush.msra.mxu0 0.0
  %118 = vmatpush.msra.mxu0 0.0
  %119 = vmatpush.msra.mxu0 0.0
  %120 = vmatpush.msra.mxu0 %v23
  %121 = vmatmul.f32.gmra.mxu0 %v58
  %v122 = vpop.f32.mrf.mxu0
  %v123 = vadd.f32 0.0, %v122
  %124 = vmatmul.f32.gmra.mxu0 %v61
  %v125 = vpop.f32.mrf.mxu0
  %v126 = vadd.f32 0.0, %v125
  %127 = vmatmul.f32.gmra.mxu0 %v64
  %v128 = vpop.f32.mrf.mxu0
  %v129 = vadd.f32 0.0, %v128
  %130 = vmatmul.f32.gmra.mxu0 %v67
  %v131 = vpop.f32.mrf.mxu0
  %v132 = vadd.f32 0.0, %v131
  %133 = vmatmul.f32.gmra.mxu0 %v70
  %v134 = vpop.f32.mrf.mxu0
  %v135 = vadd.f32 0.0, %v134
  %136 = vmatmul.f32.gmra.mxu0 %v73
  %v137 = vpop.f32.mrf.mxu0
  %v138 = vadd.f32 0.0, %v137
  %139 = vmatmul.f32.gmra.mxu0 %v76
  %v140 = vpop.f32.mrf.mxu0
  %v141 = vadd.f32 0.0, %v140
  %142 = vmatmul.f32.gmra.mxu0 %v79
  %v143 = vpop.f32.mrf.mxu0
  %v144 = vadd.f32 0.0, %v143
  %145 = vmatmul.f32.gmra.mxu0 %v82
  %v146 = vpop.f32.mrf.mxu0
  %v147 = vadd.f32 0.0, %v146
  %148 = vmatmul.f32.gmra.mxu0 %v85
  %v149 = vpop.f32.mrf.mxu0
  %v150 = vadd.f32 0.0, %v149
  %151 = vmatmul.f32.gmra.mxu0 %v88
  %v152 = vpop.f32.mrf.mxu0
  %v153 = vadd.f32 0.0, %v152
  %154 = vmatmul.f32.gmra.mxu0 %v91
  %v155 = vpop.f32.mrf.mxu0
  %v156 = vadd.f32 0.0, %v155
  %157 = vmatmul.f32.gmra.mxu0 %v94
  %v158 = vpop.f32.mrf.mxu0
  %v159 = vadd.f32 0.0, %v158
  %160 = vmatmul.f32.gmra.mxu0 %v97
  %v161 = vpop.f32.mrf.mxu0
  %v162 = vadd.f32 0.0, %v161
  %163 = vmatmul.f32.gmra.mxu0 %v100
  %v164 = vpop.f32.mrf.mxu0
  %v165 = vadd.f32 0.0, %v164
  %166 = vmatmul.f32.gmra.mxu0 %v103
  %v167 = vpop.f32.mrf.mxu0
  %v168 = vadd.f32 0.0, %v167
  %169 = vdwg.mxu0
  %170 = vxpose.xlu0.b32.start [1/16] %v21, 128
  %171 = vxpose.xlu0.b32.cont [2/16] 0.0, 128
  %172 = vxpose.xlu0.b32.cont [3/16] 0.0, 128
  %173 = vxpose.xlu0.b32.cont [4/16] 0.0, 128
  %174 = vxpose.xlu0.b32.cont [5/16] 0.0, 128
  %175 = vxpose.xlu0.b32.cont [6/16] 0.0, 128
  %176 = vxpose.xlu0.b32.cont [7/16] 0.0, 128
  %177 = vxpose.xlu0.b32.cont [8/16] 0.0, 128
  %178 = vxpose.xlu0.b32.cont [9/16] 0.0, 128
  %179 = vxpose.xlu0.b32.cont [10/16] 0.0, 128
  %180 = vxpose.xlu0.b32.cont [11/16] 0.0, 128
  %181 = vxpose.xlu0.b32.cont [12/16] 0.0, 128
  %182 = vxpose.xlu0.b32.cont [13/16] 0.0, 128
  %183 = vxpose.xlu0.b32.cont [14/16] 0.0, 128
  %184 = vxpose.xlu0.b32.cont [15/16] 0.0, 128
  %185 = vxpose.xlu0.b32.end [16/16] 0.0, 128
  %v186 = vpop.trf.xlu0
  %v187 = vpop.trf.xlu0
  %v188 = vpop.trf.xlu0
  %v189 = vpop.trf.xlu0
  %v190 = vpop.trf.xlu0
  %v191 = vpop.trf.xlu0
  %v192 = vpop.trf.xlu0
  %v193 = vpop.trf.xlu0
  %v194 = vpop.trf.xlu0
  %v195 = vpop.trf.xlu0
  %v196 = vpop.trf.xlu0
  %v197 = vpop.trf.xlu0
  %v198 = vpop.trf.xlu0
  %v199 = vpop.trf.xlu0
  %v200 = vpop.trf.xlu0
  %v201 = vpop.trf.xlu0
  %v203 = vsel %vm56, %v186, 0
  %v206 = vsel %vm56, %v187, 0
  %v209 = vsel %vm56, %v188, 0
  %v212 = vsel %vm56, %v189, 0
  %v215 = vsel %vm56, %v190, 0
  %v218 = vsel %vm56, %v191, 0
  %v221 = vsel %vm56, %v192, 0
  %v224 = vsel %vm56, %v193, 0
  %v227 = vsel %vm56, %v194, 0
  %v230 = vsel %vm56, %v195, 0
  %v233 = vsel %vm56, %v196, 0
  %v236 = vsel %vm56, %v197, 0
  %v239 = vsel %vm56, %v198, 0
  %v242 = vsel %vm56, %v199, 0
  %v245 = vsel %vm56, %v200, 0
  %v248 = vsel %vm56, %v201, 0
  %250 = vmatpush.msra.mxu0 0.0
  %251 = vmatpush.msra.mxu0 0.0
  %252 = vmatpush.msra.mxu0 0.0
  %253 = vmatpush.msra.mxu0 0.0
  %254 = vmatpush.msra.mxu0 0.0
  %255 = vmatpush.msra.mxu0 0.0
  %256 = vmatpush.msra.mxu0 0.0
  %257 = vmatpush.msra.mxu0 0.0
  %258 = vmatpush.msra.mxu0 0.0
  %259 = vmatpush.msra.mxu0 0.0
  %260 = vmatpush.msra.mxu0 0.0
  %261 = vmatpush.msra.mxu0 0.0
  %262 = vmatpush.msra.mxu0 0.0
  %263 = vmatpush.msra.mxu0 0.0
  %264 = vmatpush.msra.mxu0 0.0
  %265 = vmatpush.msra.mxu0 %v22
  %266 = vmatmul.f32.gmra.mxu0 %v203
  %v267 = vpop.f32.mrf.mxu0
  %v268 = vadd.f32 0.0, %v267
  %269 = vmatmul.f32.gmra.mxu0 %v206
  %v270 = vpop.f32.mrf.mxu0
  %v271 = vadd.f32 0.0, %v270
  %272 = vmatmul.f32.gmra.mxu0 %v209
  %v273 = vpop.f32.mrf.mxu0
  %v274 = vadd.f32 0.0, %v273
  %275 = vmatmul.f32.gmra.mxu0 %v212
  %v276 = vpop.f32.mrf.mxu0
  %v277 = vadd.f32 0.0, %v276
  %278 = vmatmul.f32.gmra.mxu0 %v215
  %v279 = vpop.f32.mrf.mxu0
  %v280 = vadd.f32 0.0, %v279
  %281 = vmatmul.f32.gmra.mxu0 %v218
  %v282 = vpop.f32.mrf.mxu0
  %v283 = vadd.f32 0.0, %v282
  %284 = vmatmul.f32.gmra.mxu0 %v221
  %v285 = vpop.f32.mrf.mxu0
  %v286 = vadd.f32 0.0, %v285
  %287 = vmatmul.f32.gmra.mxu0 %v224
  %v288 = vpop.f32.mrf.mxu0
  %v289 = vadd.f32 0.0, %v288
  %290 = vmatmul.f32.gmra.mxu0 %v227
  %v291 = vpop.f32.mrf.mxu0
  %v292 = vadd.f32 0.0, %v291
  %293 = vmatmul.f32.gmra.mxu0 %v230
  %v294 = vpop.f32.mrf.mxu0
  %v295 = vadd.f32 0.0, %v294
  %296 = vmatmul.f32.gmra.mxu0 %v233
  %v297 = vpop.f32.mrf.mxu0
  %v298 = vadd.f32 0.0, %v297
  %299 = vmatmul.f32.gmra.mxu0 %v236
  %v300 = vpop.f32.mrf.mxu0
  %v301 = vadd.f32 0.0, %v300
  %302 = vmatmul.f32.gmra.mxu0 %v239
  %v303 = vpop.f32.mrf.mxu0
  %v304 = vadd.f32 0.0, %v303
  %305 = vmatmul.f32.gmra.mxu0 %v242
  %v306 = vpop.f32.mrf.mxu0
  %v307 = vadd.f32 0.0, %v306
  %308 = vmatmul.f32.gmra.mxu0 %v245
  %v309 = vpop.f32.mrf.mxu0
  %v310 = vadd.f32 0.0, %v309
  %311 = vmatmul.f32.gmra.mxu0 %v248
  %v312 = vpop.f32.mrf.mxu0
  %v313 = vadd.f32 0.0, %v312
  %314 = vdwg.mxu0
  %v315 = vld [vmem:[%s0] sm:$0xff]
  %v316 = vld [vmem:[%s0 + $0x8] sm:$0xff]
  %v317 = vld [vmem:[%s0 + $0x10] sm:$0xff]
  %v318 = vld [vmem:[%s0 + $0x18] sm:$0xff]
  %v319 = vld [vmem:[%s0 + $0x20] sm:$0xff]
  %v320 = vld [vmem:[%s0 + $0x28] sm:$0xff]
  %v321 = vld [vmem:[%s0 + $0x30] sm:$0xff]
  %v322 = vld [vmem:[%s0 + $0x38] sm:$0xff]
  %v323 = vld [vmem:[%s0 + $0x40] sm:$0xff]
  %v324 = vld [vmem:[%s0 + $0x48] sm:$0xff]
  %v325 = vld [vmem:[%s0 + $0x50] sm:$0xff]
  %v326 = vld [vmem:[%s0 + $0x58] sm:$0xff]
  %v327 = vld [vmem:[%s0 + $0x60] sm:$0xff]
  %v328 = vld [vmem:[%s0 + $0x68] sm:$0xff]
  %v329 = vld [vmem:[%s0 + $0x70] sm:$0xff]
  %v330 = vld [vmem:[%s0 + $0x78] sm:$0xff]
  %v331 = vmul.f32 %v315, 0.99
  %v332 = vmul.f32 %v316, 0.99
  %v333 = vmul.f32 %v317, 0.99
  %v334 = vmul.f32 %v318, 0.99
  %v335 = vmul.f32 %v319, 0.99
  %v336 = vmul.f32 %v320, 0.99
  %v337 = vmul.f32 %v321, 0.99
  %v338 = vmul.f32 %v322, 0.99
  %v339 = vmul.f32 %v323, 0.99
  %v340 = vmul.f32 %v324, 0.99
  %v341 = vmul.f32 %v325, 0.99
  %v342 = vmul.f32 %v326, 0.99
  %v343 = vmul.f32 %v327, 0.99
  %v344 = vmul.f32 %v328, 0.99
  %v345 = vmul.f32 %v329, 0.99
  %v346 = vmul.f32 %v330, 0.99
  %v347 = vsub.f32 %v123, %v268
  %v348 = vsub.f32 %v126, %v271
  %v349 = vsub.f32 %v129, %v274
  %v350 = vsub.f32 %v132, %v277
  %v351 = vsub.f32 %v135, %v280
  %v352 = vsub.f32 %v138, %v283
  %v353 = vsub.f32 %v141, %v286
  %v354 = vsub.f32 %v144, %v289
  %v355 = vsub.f32 %v147, %v292
  %v356 = vsub.f32 %v150, %v295
  %v357 = vsub.f32 %v153, %v298
  %v358 = vsub.f32 %v156, %v301
  %v359 = vsub.f32 %v159, %v304
  %v360 = vsub.f32 %v162, %v307
  %v361 = vsub.f32 %v165, %v310
  %v362 = vsub.f32 %v168, %v313
  %v363 = vmul.f32 %v347, 0.01
  %v364 = vmul.f32 %v348, 0.01
  %v365 = vmul.f32 %v349, 0.01
  %v366 = vmul.f32 %v350, 0.01
  %v367 = vmul.f32 %v351, 0.01
  %v368 = vmul.f32 %v352, 0.01
  %v369 = vmul.f32 %v353, 0.01
  %v370 = vmul.f32 %v354, 0.01
  %v371 = vmul.f32 %v355, 0.01
  %v372 = vmul.f32 %v356, 0.01
  %v373 = vmul.f32 %v357, 0.01
  %v374 = vmul.f32 %v358, 0.01
  %v375 = vmul.f32 %v359, 0.01
  %v376 = vmul.f32 %v360, 0.01
  %v377 = vmul.f32 %v361, 0.01
  %v378 = vmul.f32 %v362, 0.01
  %v379 = vadd.f32 %v331, %v363
  %v380 = vadd.f32 %v332, %v364
  %v381 = vadd.f32 %v333, %v365
  %v382 = vadd.f32 %v334, %v366
  %v383 = vadd.f32 %v335, %v367
  %v384 = vadd.f32 %v336, %v368
  %v385 = vadd.f32 %v337, %v369
  %v386 = vadd.f32 %v338, %v370
  %v387 = vadd.f32 %v339, %v371
  %v388 = vadd.f32 %v340, %v372
  %v389 = vadd.f32 %v341, %v373
  %v390 = vadd.f32 %v342, %v374
  %v391 = vadd.f32 %v343, %v375
  %v392 = vadd.f32 %v344, %v376
  %v393 = vadd.f32 %v345, %v377
  %v394 = vadd.f32 %v346, %v378
  %v395 = vmax.f32 %v379, -1.0
  %v396 = vmax.f32 %v380, -1.0
  %v397 = vmax.f32 %v381, -1.0
  %v398 = vmax.f32 %v382, -1.0
  %v399 = vmax.f32 %v383, -1.0
  %v400 = vmax.f32 %v384, -1.0
  %v401 = vmax.f32 %v385, -1.0
  %v402 = vmax.f32 %v386, -1.0
  %v403 = vmax.f32 %v387, -1.0
  %v404 = vmax.f32 %v388, -1.0
  %v405 = vmax.f32 %v389, -1.0
  %v406 = vmax.f32 %v390, -1.0
  %v407 = vmax.f32 %v391, -1.0
  %v408 = vmax.f32 %v392, -1.0
  %v409 = vmax.f32 %v393, -1.0
  %v410 = vmax.f32 %v394, -1.0
  %v411 = vmin.f32 %v395, 1.0
  %v412 = vmin.f32 %v396, 1.0
  %v413 = vmin.f32 %v397, 1.0
  %v414 = vmin.f32 %v398, 1.0
  %v415 = vmin.f32 %v399, 1.0
  %v416 = vmin.f32 %v400, 1.0
  %v417 = vmin.f32 %v401, 1.0
  %v418 = vmin.f32 %v402, 1.0
  %v419 = vmin.f32 %v403, 1.0
  %v420 = vmin.f32 %v404, 1.0
  %v421 = vmin.f32 %v405, 1.0
  %v422 = vmin.f32 %v406, 1.0
  %v423 = vmin.f32 %v407, 1.0
  %v424 = vmin.f32 %v408, 1.0
  %v425 = vmin.f32 %v409, 1.0
  %v426 = vmin.f32 %v410, 1.0
  %427 = vst [vmem:[%s5] sm:$0xff] %v411
  %428 = vst [vmem:[%s5 + $0x8] sm:$0xff] %v412
  %429 = vst [vmem:[%s5 + $0x10] sm:$0xff] %v413
  %430 = vst [vmem:[%s5 + $0x18] sm:$0xff] %v414
  %431 = vst [vmem:[%s5 + $0x20] sm:$0xff] %v415
  %432 = vst [vmem:[%s5 + $0x28] sm:$0xff] %v416
  %433 = vst [vmem:[%s5 + $0x30] sm:$0xff] %v417
  %434 = vst [vmem:[%s5 + $0x38] sm:$0xff] %v418
  %435 = vst [vmem:[%s5 + $0x40] sm:$0xff] %v419
  %436 = vst [vmem:[%s5 + $0x48] sm:$0xff] %v420
  %437 = vst [vmem:[%s5 + $0x50] sm:$0xff] %v421
  %438 = vst [vmem:[%s5 + $0x58] sm:$0xff] %v422
  %439 = vst [vmem:[%s5 + $0x60] sm:$0xff] %v423
  %440 = vst [vmem:[%s5 + $0x68] sm:$0xff] %v424
  %441 = vst [vmem:[%s5 + $0x70] sm:$0xff] %v425
  %442 = vst [vmem:[%s5 + $0x78] sm:$0xff] %v426
  // Predicated region
  $region22: #{sgru_cell_forward.3} parent=0 // pred_check
    _
  $region23: #{sgru_cell_forward.3} parent=0 // pred_check_branch
    %444 = sbr.rel (0) target = $region25
  $region24: #{sgru_cell_forward.3} parent=0 // pred_region
    _
  $region25: #{sgru_cell_forward.3} parent=0 // pred_fallthru
    _
  // Predicated region
  $region26: #{sgru_cell_forward.3} parent=0 // pred_check
    _
  $region27: #{sgru_cell_forward.3} parent=0 // pred_check_branch
    %446 = sbr.rel (0) target = $region29
  $region28: #{sgru_cell_forward.3} parent=0 // pred_region
    _
  $region29: #{sgru_cell_forward.3} parent=0 // pred_fallthru
    _

// kernel: sgru_cell_forward.2
$region0: #{sgru_cell_forward.2}
  #allocation0 [shape = 'u32[]', space=smem, size = 0x4, offset = 0x4, fixed_abs, tag = 'smem constant byte address 0x4 - core index']
  #allocation1 [shape = 'u32[72,128]{1,0:T(1,128)}', space=vmem, size = 0x9000, scoped, tag = 'internal scratch']
  %s0 = inlined_call_operand.vmem [shape: f32[8,32], index: 0, kind: input, shape index: {}]
  %s1 = inlined_call_operand.vmem [shape: f32[8,128], index: 1, kind: input, shape index: {}]
  %s2 = inlined_call_operand.vmem [shape: f32[8,128], index: 2, kind: input, shape index: {}, may-alias: {2,16}]
  %s3 = inlined_call_operand.vmem [shape: f32[8,128], index: 3, kind: input, shape index: {}]
  %s4 = inlined_call_operand.vmem [shape: f32[128,128], index: 4, kind: input, shape index: {}]
  %s5 = inlined_call_operand.vmem [shape: f32[32,128], index: 5, kind: input, shape index: {}]
  %s6 = inlined_call_operand.vmem [shape: f32[32,128], index: 6, kind: input, shape index: {}]
  %s7 = inlined_call_operand.vmem [shape: f32[32,128], index: 7, kind: input, shape index: {}]
  %s8 = inlined_call_operand.vmem [shape: f32[128,128], index: 8, kind: input, shape index: {}]
  %s9 = inlined_call_operand.vmem [shape: f32[128,128], index: 9, kind: input, shape index: {}]
  %s10 = inlined_call_operand.vmem [shape: f32[128,128], index: 10, kind: input, shape index: {}]
  %s11 = inlined_call_operand.vmem [shape: f32[1,128], index: 11, kind: input, shape index: {}]
  %s12 = inlined_call_operand.vmem [shape: f32[1,128], index: 12, kind: input, shape index: {}]
  %s13 = inlined_call_operand.vmem [shape: f32[1,128], index: 13, kind: input, shape index: {}]
  %s14 = inlined_call_operand.vmem [shape: f32[1,128], index: 14, kind: input, shape index: {}]
  %s15 = inlined_call_operand.vmem [shape: f32[1,128], index: 15, kind: input, shape index: {}]
  %s16 = inlined_call_operand.vmem [shape: f32[8,128], index: 16, kind: output, shape index: {0}, may-alias: {2,16}]
  %s17 = inlined_call_operand.vmem [shape: f32[8,128], index: 17, kind: output, shape index: {1}]
  %s18 = inlined_call_operand.hbm [shape: f32[8,128], index: 18, kind: output, shape index: {2}]
  %19 = xla_tuple %s16, %s17, %s18
  %s20 = sld [smem:[#allocation0]]
  $region90: #{sgru_cell_forward.2} parent=0
    _
  %s22 = ssub.s32 1, %s20
  %s23 = scalar_select 0, %s22, %s20
  $region1: #{sgru_cell_forward.2} parent=0
    #allocation2 [shape = 'u8[4096]{0}', space=vmem, size = 0x1000, scoped, tag = 'output window, operand 2, single buffered']
    #allocation3 [shape = 's32[1]{0}', space=sflag, size = 0x4, scoped, tag = 'scoped memory for sgru_cell_forward.2']
    %24 = vsyncpa [#allocation3], 0
    // Predicated region
    $region2: #{sgru_cell_forward.2} parent=1 // pred_check
      _
    $region3: #{sgru_cell_forward.2} parent=1 // pred_check_branch
      %26 = sbr.rel (0) target = $region5
    $region4: #{sgru_cell_forward.2} parent=1 // pred_region
      _
    $region5: #{sgru_cell_forward.2} parent=1 // pred_fallthru
      _
    // Predicated region
    $region6: #{sgru_cell_forward.2} parent=1 // pred_check
      _
    $region7: #{sgru_cell_forward.2} parent=1 // pred_check_branch
      %28 = sbr.rel (0) target = $region9
    $region8: #{sgru_cell_forward.2} parent=1 // pred_region
      _
    $region9: #{sgru_cell_forward.2} parent=1 // pred_fallthru
      _
    // Predicated region
    $region10: #{sgru_cell_forward.2} parent=1 // pred_check
      _
    $region11: #{sgru_cell_forward.2} parent=1 // pred_check_branch
      %30 = sbr.rel (0) target = $region13
    $region12: #{sgru_cell_forward.2} parent=1 // pred_region
      _
    $region13: #{sgru_cell_forward.2} parent=1 // pred_fallthru
      _
    // Predicated region
    $region14: #{sgru_cell_forward.2} parent=1 // pred_check
      _
    $region15: #{sgru_cell_forward.2} parent=1 // pred_check_branch
      %32 = sbr.rel (0) target = $region17
    $region16: #{sgru_cell_forward.2} parent=1 // pred_region
      _
    $region17: #{sgru_cell_forward.2} parent=1 // pred_fallthru
      _
    // Predicated region
    $region18: #{sgru_cell_forward.2} parent=1 // pred_check
      _
    $region19: #{sgru_cell_forward.2} parent=1 // pred_check_branch
      %34 = sbr.rel (0) target = $region21
    $region20: #{sgru_cell_forward.2} parent=1 // pred_region
      _
    $region21: #{sgru_cell_forward.2} parent=1 // pred_fallthru
      _
    // Predicated region
    $region22: #{sgru_cell_forward.2} parent=1 // pred_check
      _
    $region23: #{sgru_cell_forward.2} parent=1 // pred_check_branch
      %36 = sbr.rel (0) target = $region25
    $region24: #{sgru_cell_forward.2} parent=1 // pred_region
      _
    $region25: #{sgru_cell_forward.2} parent=1 // pred_fallthru
      _
    // Predicated region
    $region26: #{sgru_cell_forward.2} parent=1 // pred_check
      _
    $region27: #{sgru_cell_forward.2} parent=1 // pred_check_branch
      %38 = sbr.rel (0) target = $region29
    $region28: #{sgru_cell_forward.2} parent=1 // pred_region
      _
    $region29: #{sgru_cell_forward.2} parent=1 // pred_fallthru
      _
    // Predicated region
    $region30: #{sgru_cell_forward.2} parent=1 // pred_check
      _
    $region31: #{sgru_cell_forward.2} parent=1 // pred_check_branch
      %40 = sbr.rel (0) target = $region33
    $region32: #{sgru_cell_forward.2} parent=1 // pred_region
      _
    $region33: #{sgru_cell_forward.2} parent=1 // pred_fallthru
      _
    // Predicated region
    $region34: #{sgru_cell_forward.2} parent=1 // pred_check
      _
    $region35: #{sgru_cell_forward.2} parent=1 // pred_check_branch
      %42 = sbr.rel (0) target = $region37
    $region36: #{sgru_cell_forward.2} parent=1 // pred_region
      _
    $region37: #{sgru_cell_forward.2} parent=1 // pred_fallthru
      _
    // Predicated region
    $region38: #{sgru_cell_forward.2} parent=1 // pred_check
      _
    $region39: #{sgru_cell_forward.2} parent=1 // pred_check_branch
      %44 = sbr.rel (0) target = $region41
    $region40: #{sgru_cell_forward.2} parent=1 // pred_region
      _
    $region41: #{sgru_cell_forward.2} parent=1 // pred_fallthru
      _
    // Predicated region
    $region42: #{sgru_cell_forward.2} parent=1 // pred_check
      _
    $region43: #{sgru_cell_forward.2} parent=1 // pred_check_branch
      %46 = sbr.rel (0) target = $region45
    $region44: #{sgru_cell_forward.2} parent=1 // pred_region
      _
    $region45: #{sgru_cell_forward.2} parent=1 // pred_fallthru
      _
    // Predicated region
    $region46: #{sgru_cell_forward.2} parent=1 // pred_check
      _
    $region47: #{sgru_cell_forward.2} parent=1 // pred_check_branch
      %48 = sbr.rel (0) target = $region49
    $region48: #{sgru_cell_forward.2} parent=1 // pred_region
      _
    $region49: #{sgru_cell_forward.2} parent=1 // pred_fallthru
      _
    // Predicated region
    $region50: #{sgru_cell_forward.2} parent=1 // pred_check
      _
    $region51: #{sgru_cell_forward.2} parent=1 // pred_check_branch
      %50 = sbr.rel (0) target = $region53
    $region52: #{sgru_cell_forward.2} parent=1 // pred_region
      _
    $region53: #{sgru_cell_forward.2} parent=1 // pred_fallthru
      _
    // Predicated region
    $region54: #{sgru_cell_forward.2} parent=1 // pred_check
      _
    $region55: #{sgru_cell_forward.2} parent=1 // pred_check_branch
      %52 = sbr.rel (0) target = $region57
    $region56: #{sgru_cell_forward.2} parent=1 // pred_region
      _
    $region57: #{sgru_cell_forward.2} parent=1 // pred_fallthru
      _
    // Predicated region
    $region58: #{sgru_cell_forward.2} parent=1 // pred_check
      _
    $region59: #{sgru_cell_forward.2} parent=1 // pred_check_branch
      %54 = sbr.rel (0) target = $region61
    $region60: #{sgru_cell_forward.2} parent=1 // pred_region
      _
    $region61: #{sgru_cell_forward.2} parent=1 // pred_fallthru
      _
    // Predicated region
    $region62: #{sgru_cell_forward.2} parent=1 // pred_check
      _
    $region63: #{sgru_cell_forward.2} parent=1 // pred_check_branch
      %56 = sbr.rel (0) target = $region65
    $region64: #{sgru_cell_forward.2} parent=1 // pred_region
      _
    $region65: #{sgru_cell_forward.2} parent=1 // pred_fallthru
      _
    %v57 = vld [vmem:[%s0] sm:$0xff]
    %v58 = vld [vmem:[%s1] sm:$0xff]
    %v59 = vld [vmem:[%s5] sm:$0xff]
    %v60 = vld [vmem:[%s5 + $0x8] sm:$0xff]
    %v61 = vld [vmem:[%s5 + $0x10] sm:$0xff]
    %v62 = vld [vmem:[%s5 + $0x18] sm:$0xff]
    %v63 = vld [vmem:[%s8] sm:$0xff]
    %v64 = vld [vmem:[%s8 + $0x8] sm:$0xff]
    %v65 = vld [vmem:[%s8 + $0x10] sm:$0xff]
    %v66 = vld [vmem:[%s8 + $0x18] sm:$0xff]
    %v67 = vld [vmem:[%s8 + $0x20] sm:$0xff]
    %v68 = vld [vmem:[%s8 + $0x28] sm:$0xff]
    %v69 = vld [vmem:[%s8 + $0x30] sm:$0xff]
    %v70 = vld [vmem:[%s8 + $0x38] sm:$0xff]
    %v71 = vld [vmem:[%s8 + $0x40] sm:$0xff]
    %v72 = vld [vmem:[%s8 + $0x48] sm:$0xff]
    %v73 = vld [vmem:[%s8 + $0x50] sm:$0xff]
    %v74 = vld [vmem:[%s8 + $0x58] sm:$0xff]
    %v75 = vld [vmem:[%s8 + $0x60] sm:$0xff]
    %v76 = vld [vmem:[%s8 + $0x68] sm:$0xff]
    %v77 = vld [vmem:[%s8 + $0x70] sm:$0xff]
    %v78 = vld [vmem:[%s8 + $0x78] sm:$0xff]
    %79 = vmatpush.msra.mxu0 %v78
    %80 = vmatpush.msra.mxu0 %v77
    %81 = vmatpush.msra.mxu0 %v76
    %82 = vmatpush.msra.mxu0 %v75
    %83 = vmatpush.msra.mxu0 %v74
    %84 = vmatpush.msra.mxu0 %v73
    %85 = vmatpush.msra.mxu0 %v72
    %86 = vmatpush.msra.mxu0 %v71
    %87 = vmatpush.msra.mxu0 %v70
    %88 = vmatpush.msra.mxu0 %v69
    %89 = vmatpush.msra.mxu0 %v68
    %90 = vmatpush.msra.mxu0 %v67
    %91 = vmatpush.msra.mxu0 %v66
    %92 = vmatpush.msra.mxu0 %v65
    %93 = vmatpush.msra.mxu0 %v64
    %94 = vmatpush.msra.mxu0 %v63
    %95 = vmatmul.f32.gmra.mxu0 %v58
    %v96 = vpop.f32.mrf.mxu0
    %v97 = vadd.f32 0.0, %v96
    %98 = vdwg.mxu0
    %vm99 = vcmask 261120
    %v101 = vsel %vm99, %v57, 0
    %103 = vmatpush.msra.mxu0 0.0
    %104 = vmatpush.msra.mxu0 0.0
    %105 = vmatpush.msra.mxu0 0.0
    %106 = vmatpush.msra.mxu0 0.0
    %107 = vmatpush.msra.mxu0 0.0
    %108 = vmatpush.msra.mxu0 0.0
    %109 = vmatpush.msra.mxu0 0.0
    %110 = vmatpush.msra.mxu0 0.0
    %111 = vmatpush.msra.mxu0 0.0
    %112 = vmatpush.msra.mxu0 0.0
    %113 = vmatpush.msra.mxu0 0.0
    %114 = vmatpush.msra.mxu0 0.0
    %115 = vmatpush.msra.mxu0 %v62
    %116 = vmatpush.msra.mxu0 %v61
    %117 = vmatpush.msra.mxu0 %v60
    %118 = vmatpush.msra.mxu0 %v59
    %119 = vmatmul.f32.gmra.mxu0 %v101
    %v120 = vpop.f32.mrf.mxu0
    %v121 = vadd.f32 %v97, %v120
    %122 = vdwg.mxu0
    %v123 = vld [vmem:[%s11] sm:$0x1]
    %v125 = vperm.slane %v123, 0
    %v127 = vadd.f32 %v121, %v125
    %v128 = vld [vmem:[%s6] sm:$0xff]
    %v129 = vld [vmem:[%s6 + $0x8] sm:$0xff]
    %v130 = vld [vmem:[%s6 + $0x10] sm:$0xff]
    %v131 = vld [vmem:[%s6 + $0x18] sm:$0xff]
    %v132 = vld [vmem:[%s9] sm:$0xff]
    %v133 = vld [vmem:[%s9 + $0x8] sm:$0xff]
    %v134 = vld [vmem:[%s9 + $0x10] sm:$0xff]
    %v135 = vld [vmem:[%s9 + $0x18] sm:$0xff]
    %v136 = vld [vmem:[%s9 + $0x20] sm:$0xff]
    %v137 = vld [vmem:[%s9 + $0x28] sm:$0xff]
    %v138 = vld [vmem:[%s9 + $0x30] sm:$0xff]
    %v139 = vld [vmem:[%s9 + $0x38] sm:$0xff]
    %v140 = vld [vmem:[%s9 + $0x40] sm:$0xff]
    %v141 = vld [vmem:[%s9 + $0x48] sm:$0xff]
    %v142 = vld [vmem:[%s9 + $0x50] sm:$0xff]
    %v143 = vld [vmem:[%s9 + $0x58] sm:$0xff]
    %v144 = vld [vmem:[%s9 + $0x60] sm:$0xff]
    %v145 = vld [vmem:[%s9 + $0x68] sm:$0xff]
    %v146 = vld [vmem:[%s9 + $0x70] sm:$0xff]
    %v147 = vld [vmem:[%s9 + $0x78] sm:$0xff]
    %148 = vmatpush.msra.mxu0 %v147
    %149 = vmatpush.msra.mxu0 %v146
    %150 = vmatpush.msra.mxu0 %v145
    %151 = vmatpush.msra.mxu0 %v144
    %152 = vmatpush.msra.mxu0 %v143
    %153 = vmatpush.msra.mxu0 %v142
    %154 = vmatpush.msra.mxu0 %v141
    %155 = vmatpush.msra.mxu0 %v140
    %156 = vmatpush.msra.mxu0 %v139
    %157 = vmatpush.msra.mxu0 %v138
    %158 = vmatpush.msra.mxu0 %v137
    %159 = vmatpush.msra.mxu0 %v136
    %160 = vmatpush.msra.mxu0 %v135
    %161 = vmatpush.msra.mxu0 %v134
    %162 = vmatpush.msra.mxu0 %v133
    %163 = vmatpush.msra.mxu0 %v132
    %164 = vmatmul.f32.gmra.mxu0 %v58
    %v165 = vpop.f32.mrf.mxu0
    %v166 = vadd.f32 0.0, %v165
    %167 = vdwg.mxu0
    %168 = vmatpush.msra.mxu0 0.0
    %169 = vmatpush.msra.mxu0 0.0
    %170 = vmatpush.msra.mxu0 0.0
    %171 = vmatpush.msra.mxu0 0.0
    %172 = vmatpush.msra.mxu0 0.0
    %173 = vmatpush.msra.mxu0 0.0
    %174 = vmatpush.msra.mxu0 0.0
    %175 = vmatpush.msra.mxu0 0.0
    %176 = vmatpush.msra.mxu0 0.0
    %177 = vmatpush.msra.mxu0 0.0
    %178 = vmatpush.msra.mxu0 0.0
    %179 = vmatpush.msra.mxu0 0.0
    %180 = vmatpush.msra.mxu0 %v131
    %181 = vmatpush.msra.mxu0 %v130
    %182 = vmatpush.msra.mxu0 %v129
    %183 = vmatpush.msra.mxu0 %v128
    %184 = vmatmul.f32.gmra.mxu0 %v101
    %v185 = vpop.f32.mrf.mxu0
    %v186 = vadd.f32 %v166, %v185
    %187 = vdwg.mxu0
    %v188 = vld [vmem:[%s12] sm:$0x1]
    %v190 = vperm.slane %v188, 0
    %v192 = vadd.f32 %v186, %v190
    %v193 = vxor.u32 %v127, 2147483648
    %v194 = vmul.f32 %v193, 1.442695
    %v195 = vpow.pop %v194
    %v196 = vadd.f32 %v195, 1.0
    %v197 = vrcp.pop %v196
    %v198 = vmul.f32 %v196, %v197
    %v199 = vsub.f32 1.0, %v198
    %v200 = vmul.f32 %v197, %v199
    %v201 = vadd.f32 %v197, %v200
    %vm202 = vweird.f32 %v196
    %vm203 = vweird.f32 %v197
    %vm204 = vmor %vm202, %vm203
    %v205 = vsel %vm204, %v197, %v201
    %v206 = vand.u32 2147483647, %v196
    %vm207 = vcmp.eq.f32.partialorder %v206, 8.507059e+37
    %v208 = vand.u32 %v196, 2147483648
    %v209 = vor.u32 1.1754944e-38, %v208
    %v210 = vsel %vm207, %v209, %v205
    %v211 = vmul.f32 1.0, %v210
    %v212 = vxor.u32 %v192, 2147483648
    %v213 = vmul.f32 %v212, 1.442695
    %v214 = vpow.pop %v213
    %v215 = vadd.f32 %v214, 1.0
    %v216 = vrcp.pop %v215
    %v217 = vmul.f32 %v215, %v216
    %v218 = vsub.f32 1.0, %v217
    %v219 = vmul.f32 %v216, %v218
    %v220 = vadd.f32 %v216, %v219
    %vm221 = vweird.f32 %v215
    %vm222 = vweird.f32 %v216
    %vm223 = vmor %vm221, %vm222
    %v224 = vsel %vm223, %v216, %v220
    %v225 = vand.u32 2147483647, %v215
    %vm226 = vcmp.eq.f32.partialorder %v225, 8.507059e+37
    %v227 = vand.u32 %v215, 2147483648
    %v228 = vor.u32 1.1754944e-38, %v227
    %v229 = vsel %vm226, %v228, %v224
    %v230 = vmul.f32 1.0, %v229
    %v231 = vld [vmem:[%s4] sm:$0xff]
    %v232 = vld [vmem:[%s4 + $0x8] sm:$0xff]
    %v233 = vld [vmem:[%s4 + $0x10] sm:$0xff]
    %v234 = vld [vmem:[%s4 + $0x18] sm:$0xff]
    %v235 = vld [vmem:[%s4 + $0x20] sm:$0xff]
    %v236 = vld [vmem:[%s4 + $0x28] sm:$0xff]
    %v237 = vld [vmem:[%s4 + $0x30] sm:$0xff]
    %v238 = vld [vmem:[%s4 + $0x38] sm:$0xff]
    %v239 = vld [vmem:[%s4 + $0x40] sm:$0xff]
    %v240 = vld [vmem:[%s4 + $0x48] sm:$0xff]
    %v241 = vld [vmem:[%s4 + $0x50] sm:$0xff]
    %v242 = vld [vmem:[%s4 + $0x58] sm:$0xff]
    %v243 = vld [vmem:[%s4 + $0x60] sm:$0xff]
    %v244 = vld [vmem:[%s4 + $0x68] sm:$0xff]
    %v245 = vld [vmem:[%s4 + $0x70] sm:$0xff]
    %v246 = vld [vmem:[%s4 + $0x78] sm:$0xff]
    %247 = vmatpush.xpose.msra.mxu0 %v246
    %248 = vmatpush.xpose.msra.mxu0 %v245
    %249 = vmatpush.xpose.msra.mxu0 %v244
    %250 = vmatpush.xpose.msra.mxu0 %v243
    %251 = vmatpush.xpose.msra.mxu0 %v242
    %252 = vmatpush.xpose.msra.mxu0 %v241
    %253 = vmatpush.xpose.msra.mxu0 %v240
    %254 = vmatpush.xpose.msra.mxu0 %v239
    %255 = vmatpush.xpose.msra.mxu0 %v238
    %256 = vmatpush.xpose.msra.mxu0 %v237
    %257 = vmatpush.xpose.msra.mxu0 %v236
    %258 = vmatpush.xpose.msra.mxu0 %v235
    %259 = vmatpush.xpose.msra.mxu0 %v234
    %260 = vmatpush.xpose.msra.mxu0 %v233
    %261 = vmatpush.xpose.msra.mxu0 %v232
    %262 = vmatpush.xpose.msra.mxu0 %v231
    %263 = vmatmul.f32.gmra.mxu0 %v58
    %v264 = vpop.f32.mrf.mxu0
    %v265 = vadd.f32 0.0, %v264
    %266 = vdwg.mxu0
    %v267 = vld [vmem:[%s7] sm:$0xff]
    %v268 = vld [vmem:[%s7 + $0x8] sm:$0xff]
    %v269 = vld [vmem:[%s7 + $0x10] sm:$0xff]
    %v270 = vld [vmem:[%s7 + $0x18] sm:$0xff]
    %v271 = vld [vmem:[%s13] sm:$0x1]
    %v273 = vperm.slane %v271, 0
    %275 = vmatpush.msra.mxu0 0.0
    %276 = vmatpush.msra.mxu0 0.0
    %277 = vmatpush.msra.mxu0 0.0
    %278 = vmatpush.msra.mxu0 0.0
    %279 = vmatpush.msra.mxu0 0.0
    %280 = vmatpush.msra.mxu0 0.0
    %281 = vmatpush.msra.mxu0 0.0
    %282 = vmatpush.msra.mxu0 0.0
    %283 = vmatpush.msra.mxu0 0.0
    %284 = vmatpush.msra.mxu0 0.0
    %285 = vmatpush.msra.mxu0 0.0
    %286 = vmatpush.msra.mxu0 0.0
    %287 = vmatpush.msra.mxu0 %v270
    %288 = vmatpush.msra.mxu0 %v269
    %289 = vmatpush.msra.mxu0 %v268
    %290 = vmatpush.msra.mxu0 %v267
    %291 = vmatmul.f32.gmra.mxu0 %v101
    %v292 = vpop.f32.mrf.mxu0
    %v293 = vadd.f32 %v273, %v292
    %294 = vdwg.mxu0
    %v295 = vld [vmem:[%s10] sm:$0xff]
    %v296 = vld [vmem:[%s10 + $0x8] sm:$0xff]
    %v297 = vld [vmem:[%s10 + $0x10] sm:$0xff]
    %v298 = vld [vmem:[%s10 + $0x18] sm:$0xff]
    %v299 = vld [vmem:[%s10 + $0x20] sm:$0xff]
    %v300 = vld [vmem:[%s10 + $0x28] sm:$0xff]
    %v301 = vld [vmem:[%s10 + $0x30] sm:$0xff]
    %v302 = vld [vmem:[%s10 + $0x38] sm:$0xff]
    %v303 = vld [vmem:[%s10 + $0x40] sm:$0xff]
    %v304 = vld [vmem:[%s10 + $0x48] sm:$0xff]
    %v305 = vld [vmem:[%s10 + $0x50] sm:$0xff]
    %v306 = vld [vmem:[%s10 + $0x58] sm:$0xff]
    %v307 = vld [vmem:[%s10 + $0x60] sm:$0xff]
    %v308 = vld [vmem:[%s10 + $0x68] sm:$0xff]
    %v309 = vld [vmem:[%s10 + $0x70] sm:$0xff]
    %v310 = vld [vmem:[%s10 + $0x78] sm:$0xff]
    %v311 = vld [vmem:[%s14] sm:$0x1]
    %v313 = vperm.slane %v311, 0
    %315 = vmatpush.msra.mxu0 %v310
    %316 = vmatpush.msra.mxu0 %v309
    %317 = vmatpush.msra.mxu0 %v308
    %318 = vmatpush.msra.mxu0 %v307
    %319 = vmatpush.msra.mxu0 %v306
    %320 = vmatpush.msra.mxu0 %v305
    %321 = vmatpush.msra.mxu0 %v304
    %322 = vmatpush.msra.mxu0 %v303
    %323 = vmatpush.msra.mxu0 %v302
    %324 = vmatpush.msra.mxu0 %v301
    %325 = vmatpush.msra.mxu0 %v300
    %326 = vmatpush.msra.mxu0 %v299
    %327 = vmatpush.msra.mxu0 %v298
    %328 = vmatpush.msra.mxu0 %v297
    %329 = vmatpush.msra.mxu0 %v296
    %330 = vmatpush.msra.mxu0 %v295
    %331 = vmatmul.f32.gmra.mxu0 %v58
    %v332 = vpop.f32.mrf.mxu0
    %v333 = vadd.f32 %v313, %v332
    %334 = vdwg.mxu0
    %v335 = vld [vmem:[%s15] sm:$0x1]
    %v336 = vand.u32 2147483647, %v335
    %v338 = vperm.slane %v336, 0
    %v340 = vmul.f32 %v338, %v265
    %v341 = vadd.f32 %v333, %v340
    %v342 = vmul.f32 %v230, %v341
    %v343 = vadd.f32 %v293, %v342
    %v344 = vsub.f32 1.0, %v211
    %v345 = vld [vmem:[%s2] sm:$0xff]
    %v346 = vmul.f32 %v344, %v345
    %v347 = vmul.f32 %v211, %v343
    %v348 = vadd.f32 %v346, %v347
    %v349 = vmax.f32 %v348, 0.0
    %v350 = vsub.f32 0.0, %v349
    %v351 = vmul.f32 %v350, 1.442695
    %v352 = vpow.pop %v351
    %v353 = vsub.f32 1.0, %v352
    %v354 = vld [vmem:[%s3] sm:$0xff]
    %v355 = vmul.f32 %v344, %v354
    %v356 = vmul.f32 %v211, %v230
    %v357 = vmul.f32 %v356, %v353
    %v358 = vadd.f32 %v355, %v357
    %359 = vst [vmem:[%s16] sm:$0xff] %v348
    %360 = vst [vmem:[%s17] sm:$0xff] %v353
    %361 = vst [vmem:[#allocation2] sm:$0xff] %v358
    // Predicated region
    $region66: #{sgru_cell_forward.2} parent=1 // pred_check
      _
    $region67: #{sgru_cell_forward.2} parent=1 // pred_check_branch
      %363 = sbr.rel (0) target = $region69
    $region68: #{sgru_cell_forward.2} parent=1 // pred_region
      _
    $region69: #{sgru_cell_forward.2} parent=1 // pred_fallthru
      _
    // Predicated region
    $region70: #{sgru_cell_forward.2} parent=1 // pred_check
      _
    $region71: #{sgru_cell_forward.2} parent=1 // pred_check_branch
      %365 = sbr.rel (0) target = $region73
    $region72: #{sgru_cell_forward.2} parent=1 // pred_region
      _
    $region73: #{sgru_cell_forward.2} parent=1 // pred_fallthru
      _
    // Predicated region
    $region74: #{sgru_cell_forward.2} parent=1 // pred_check
      _
    $region75: #{sgru_cell_forward.2} parent=1 // pred_check_branch
      %367 = sbr.rel (0) target = $region77
    $region76: #{sgru_cell_forward.2} parent=1 // pred_region
      %369 = vsyncadd [#allocation3], 0
      %s371 = sshll.u32 [#allocation2], 4
      %s372 = int_to_ptr.vmem [resolvable:$true] %s371
      %s373 = sshll.u32 %s18, 4
      %s374 = int_to_ptr.hbm [resolvable:$true] %s373
      %376 = dma.vmem_to_hbm [thread:$0]  %s372, 128, %s374, [#allocation3]
    $region77: #{sgru_cell_forward.2} parent=1 // pred_fallthru
      _
    // Predicated region
    $region78: #{sgru_cell_forward.2} parent=1 // pred_check
      _
    $region79: #{sgru_cell_forward.2} parent=1 // pred_check_branch
      %378 = sbr.rel (0) target = $region81
    $region80: #{sgru_cell_forward.2} parent=1 // pred_region
      _
    $region81: #{sgru_cell_forward.2} parent=1 // pred_fallthru
      _
    // Predicated region
    $region82: #{sgru_cell_forward.2} parent=1 // pred_check
      _
    $region83: #{sgru_cell_forward.2} parent=1 // pred_check_branch
      %380 = sbr.rel (0) target = $region85
    $region84: #{sgru_cell_forward.2} parent=1 // pred_region
      _
    $region85: #{sgru_cell_forward.2} parent=1 // pred_fallthru
      _
    // Predicated region
    $region86: #{sgru_cell_forward.2} parent=1 // pred_check
      _
    $region87: #{sgru_cell_forward.2} parent=1 // pred_check_branch
      %382 = sbr.rel (0) target = $region89
    $region88: #{sgru_cell_forward.2} parent=1 // pred_region
      %384 = dma.done [#allocation3], 128
    $region89: #{sgru_cell_forward.2} parent=1 // pred_fallthru
      _
    %385 = vsyncpa [#allocation3], 1

</llo_original>
